<compile_context>
chip_gen: v7x
topology: tpu7x:2x2x1
jax: 0.10.0
libtpu: 0.0.40
codegen_flags: <defaults>
</compile_context>

<pallas_src>
import functools

import jax
import jax.numpy as jnp
from jax.experimental import pallas as pl
from jax.experimental.pallas import tpu as pltpu


def _fused_matmul_kernel(im_ref, w_ref, b_ref, out_ref, *, b_blk):
    """One batch-block per grid step.

    im_ref  : (b_blk, HW, KKC)   im2col activations for this batch block
    w_ref   : (C_out, KKC)       fused weights  w_dw * bn_scale * w_pw  (tap-major, chan-minor)
    b_ref   : (C_out, 1)         fused bias, f32
    out_ref : (b_blk, C_out, HW) NCHW-ordered, spatially flattened (lane-dense)
    """
    w = w_ref[...]
    b = b_ref[...]
    for i in range(b_blk):
        act = im_ref[i]                                              # (HW, KKC)
        # Single NT matmul on the MXU: (C_out, KKC) x (HW, KKC)^T -> (C_out, HW), f32 acc.
        res = jax.lax.dot_general(
            w, act, (((1,), (1,)), ((), ())),
            preferred_element_type=jnp.float32)
        out_ref[i] = (res + b).astype(out_ref.dtype)


def depthwise_conv2d_forward(x_nchw, params, *, kernel_size, padding, stride, eps=1e-5):
    N, C, H, W = x_nchw.shape
    K = kernel_size
    H_out = (H + 2 * padding - K) // stride + 1
    W_out = (W + 2 * padding - K) // stride + 1
    HW = H_out * W_out
    C_out = params["w_pw"].shape[1]
    KKC = K * K * C

    # --- wrapper-side im2col (cheap: K*K*C*HW*4B per image) -------------------------------
    # NCHW -> NHWC + zero pad, then extract all K*K taps (stride handled here, NOT in-kernel).
    x_nhwc = jnp.transpose(x_nchw, (0, 2, 3, 1))
    xpad = jnp.pad(x_nhwc, ((0, 0), (padding, padding), (padding, padding), (0, 0)))
    taps = []
    for kh in range(K):
        for kw in range(K):
            taps.append(
                xpad[:, kh:kh + (H_out - 1) * stride + 1:stride,
                        kw:kw + (W_out - 1) * stride + 1:stride, :])   # (N, H_out, W_out, C)
    im2col = jnp.stack(taps, axis=-2)                                  # (N, H_out, W_out, K*K, C)
    im2col = im2col.reshape(N, HW, KKC).astype(x_nchw.dtype)

    # --- constant folding: depthwise conv + eval-mode BN + 1x1 conv ------------------------
    scale = params["gamma"] * jax.lax.rsqrt(params["running_var"] + eps)     # (C,)
    shift = params["beta"] - params["running_mean"] * scale                  # (C,)
    tmp = (params["w_dw"] * scale).reshape(K * K, C)                         # (K*K, C)
    w3 = tmp[:, :, None] * params["w_pw"][None, :, :]                        # (K*K, C, C_out)
    w_comb = jnp.transpose(w3, (2, 0, 1)).reshape(C_out, KKC)                # (C_out, K*K*C)
    w_comb = w_comb.astype(x_nchw.dtype)
    b_comb = (params["b_dw"] * scale + shift) @ params["w_pw"] + params["b_pw"]
    b_comb = b_comb.reshape(C_out, 1).astype(jnp.float32)

    # --- batch blocking: 2 parallel grid steps for even N (v7x 2 TCs), batch folded inside.
    if N >= 2 and N % 2 == 0:
        b_blk, grid_n = N // 2, 2
    else:
        b_blk, grid_n = 1, N

    kernel = functools.partial(_fused_matmul_kernel, b_blk=b_blk)

    out_flat = pl.pallas_call(
        kernel,
        out_shape=jax.ShapeDtypeStruct((N, C_out, HW), x_nchw.dtype),
        grid=(grid_n,),
        in_specs=[
            pl.BlockSpec((b_blk, HW, KKC), lambda n: (n, 0, 0)),
            pl.BlockSpec((C_out, KKC), lambda n: (0, 0)),
            pl.BlockSpec((C_out, 1), lambda n: (0, 0)),
        ],
        out_specs=pl.BlockSpec((b_blk, C_out, HW), lambda n: (n, 0, 0)),
        compiler_params=pltpu.CompilerParams(
            dimension_semantics=("parallel",),
            allow_input_fusion=[True, False, False]),
    )(im2col, w_comb, b_comb)

    # Metadata-only reshape: (N, C_out, H_out*W_out) -> NCHW.
    return out_flat.reshape(N, C_out, H_out, W_out)


def _reference_forward(x_nchw, params, *, kernel_size, padding, stride, eps=1e-5):
    """Pure-JAX reference (mirrors the PyTorch nn.Sequential in eval mode)."""
    N, C, H, W = x_nchw.shape
    # depthwise conv
    w_oihw = jnp.transpose(params["w_dw"], (2, 0, 1))[:, None, :, :]   # (C,1,K,K)
    y = jax.lax.conv_general_dilated(
        x_nchw, w_oihw, window_strides=(stride, stride),
        padding=[(padding, padding), (padding, padding)],
        feature_group_count=C, dimension_numbers=("NCHW", "OIHW", "NCHW"))
    y = y + params["b_dw"].reshape(1, C, 1, 1)
    # batchnorm (eval)
    scale = params["gamma"] / jnp.sqrt(params["running_var"] + eps)
    shift = params["beta"] - params["running_mean"] * scale
    y = y * scale.reshape(1, C, 1, 1) + shift.reshape(1, C, 1, 1)
    # 1x1 conv
    w_pw_oihw = jnp.transpose(params["w_pw"], (1, 0))[:, :, None, None]  # (C_out,C,1,1)
    y = jax.lax.conv_general_dilated(
        y, w_pw_oihw, window_strides=(1, 1), padding=[(0, 0), (0, 0)],
        dimension_numbers=("NCHW", "OIHW", "NCHW"))
    y = y + params["b_pw"].reshape(1, -1, 1, 1)
    return y


if __name__ == "__main__":
    # DepthWiseConv2d(dim_in=4, dim_out=8, kernel_size=3, padding=1, stride=1, bias=True)
    dim_in, dim_out, kernel_size, padding, stride = 4, 8, 3, 1, 1
    N, H, W = 2, 16, 16

    key = jax.random.PRNGKey(0)
    kx, k1, k2, k3, k4, k5, k6, k7, k8 = jax.random.split(key, 9)

    x = jax.random.normal(kx, (N, dim_in, H, W), dtype=jnp.float32)

    params = {
        # depthwise conv: PyTorch weight is (dim_in, 1, K, K); stored here as (K, K, C)
        "w_dw": jax.random.normal(k1, (kernel_size, kernel_size, dim_in), jnp.float32) * 0.1,
        "b_dw": jax.random.normal(k2, (dim_in,), jnp.float32) * 0.1,
        # BatchNorm2d(dim_in) parameters + running stats (deterministic, eval mode)
        "gamma": 1.0 + 0.1 * jax.random.normal(k3, (dim_in,), jnp.float32),
        "beta": 0.1 * jax.random.normal(k4, (dim_in,), jnp.float32),
        "running_mean": 0.1 * jax.random.normal(k5, (dim_in,), jnp.float32),
        "running_var": 1.0 + jnp.abs(jax.random.normal(k6, (dim_in,), jnp.float32)) * 0.1,
        # pointwise conv: PyTorch weight is (dim_out, dim_in, 1, 1); stored as (C, C_out)
        "w_pw": jax.random.normal(k7, (dim_in, dim_out), jnp.float32) * 0.1,
        "b_pw": jax.random.normal(k8, (dim_out,), jnp.float32) * 0.1,
    }

    out = depthwise_conv2d_forward(x, params, kernel_size=kernel_size,
                                   padding=padding, stride=stride)
    out = jax.block_until_ready(out)

    ref = _reference_forward(x, params, kernel_size=kernel_size,
                             padding=padding, stride=stride)
    assert out.shape == (N, dim_out, H, W), out.shape
    assert jnp.allclose(out, ref, atol=1e-4, rtol=1e-4), float(jnp.max(jnp.abs(out - ref)))

    print("KERNEL_OK")
</pallas_src>

<mosaic_0001>
module attributes {stable_mosaic.version = 11 : i64} {
  func.func @_fused_matmul_kernel(%arg0: i32, %arg1: memref<1x256x36xf32, #tpu.memory_space<vmem>>, %arg2: memref<8x36xf32, #tpu.memory_space<vmem>>, %arg3: memref<8x1xf32, #tpu.memory_space<vmem>>, %arg4: memref<1x8x256xf32, #tpu.memory_space<vmem>>) attributes {dimension_semantics = [#tpu.dimension_semantics<parallel>], iteration_bounds = array<i64: 2>, scalar_prefetch = 0 : i64, scratch_operands = 0 : i64, tpu.core_type = #tpu.core_type<tc>, window_params = [{transform_indices = @transform_0, window_bounds = array<i64: 1, 256, 36>}, {pipeline_mode = #tpu.pipeline_mode<synchronous>, transform_indices = @transform_1, window_bounds = array<i64: 8, 36>}, {pipeline_mode = #tpu.pipeline_mode<synchronous>, transform_indices = @transform_2, window_bounds = array<i64: 8, 1>}, {transform_indices = @transform_3, window_bounds = array<i64: 1, 8, 256>}]} {
    %c0 = arith.constant 0 : index
    %c0_0 = arith.constant 0 : index
    %0 = vector.load %arg2[%c0, %c0_0] : memref<8x36xf32, #tpu.memory_space<vmem>>, vector<8x36xf32>
    %c0_1 = arith.constant 0 : index
    %c0_2 = arith.constant 0 : index
    %1 = vector.load %arg3[%c0_1, %c0_2] : memref<8x1xf32, #tpu.memory_space<vmem>>, vector<8x1xf32>
    %c0_3 = arith.constant 0 : index
    %c0_4 = arith.constant 0 : index
    %c0_5 = arith.constant 0 : index
    %2 = vector.load %arg1[%c0_3, %c0_4, %c0_5] : memref<1x256x36xf32, #tpu.memory_space<vmem>>, vector<1x256x36xf32>
    %3 = vector.shape_cast %2 : vector<1x256x36xf32> to vector<256x36xf32>
    %cst = arith.constant dense<0.000000e+00> : vector<8x256xf32>
    %4 = tpu.matmul %0, %3, %cst {dimension_numbers = #tpu.dot_dimension_numbers<[1], [1], [0], [0], [0, 0, 1, 0], [], []>} : vector<8x36xf32>, vector<256x36xf32>, vector<8x256xf32> -> vector<8x256xf32>
    %5 = vector.broadcast %1 : vector<8x1xf32> to vector<8x256xf32>
    %6 = arith.addf %4, %5 : vector<8x256xf32>
    %c0_6 = arith.constant 0 : index
    %c0_7 = arith.constant 0 : index
    %c0_8 = arith.constant 0 : index
    %7 = vector.load %arg4[%c0_6, %c0_7, %c0_8] : memref<1x8x256xf32, #tpu.memory_space<vmem>>, vector<1x8x256xf32>
    %8 = vector.shape_cast %7 : vector<1x8x256xf32> to vector<8x256xf32>
    %9 = vector.shape_cast %6 : vector<8x256xf32> to vector<1x8x256xf32>
    tpu.vector_store %arg4[%c0_6, %c0_7, %c0_8], %9 {strides = array<i32>} : memref<1x8x256xf32, #tpu.memory_space<vmem>>, vector<1x8x256xf32>,
    return
  }
  func.func @transform_0(%arg0: i32) -> (i32, i32, i32) {
    %c0_i32 = arith.constant 0 : i32
    %c0_i32_0 = arith.constant 0 : i32
    %c0_i32_1 = arith.constant 0 : i32
    return %arg0, %c0_i32, %c0_i32_0 : i32, i32, i32
  }
  func.func @transform_1(%arg0: i32) -> (i32, i32) {
    %c0_i32 = arith.constant 0 : i32
    %c0_i32_0 = arith.constant 0 : i32
    %c0_i32_1 = arith.constant 0 : i32
    return %c0_i32, %c0_i32_0 : i32, i32
  }
  func.func @transform_2(%arg0: i32) -> (i32, i32) {
    %c0_i32 = arith.constant 0 : i32
    %c0_i32_0 = arith.constant 0 : i32
    %c0_i32_1 = arith.constant 0 : i32
    return %c0_i32, %c0_i32_0 : i32, i32
  }
  func.func @transform_3(%arg0: i32) -> (i32, i32, i32) {
    %c0_i32 = arith.constant 0 : i32
    %c0_i32_0 = arith.constant 0 : i32
    %c0_i32_1 = arith.constant 0 : i32
    return %arg0, %c0_i32, %c0_i32_0 : i32, i32, i32
  }
}

</mosaic_0001>

<llo_original>
// kernel: tpu_custom_call.1
$region0: #{tpu_custom_call.1}
  #allocation0 [shape = 'u32[]', space=smem, size = 0x4, offset = 0x4, fixed_abs, tag = 'smem constant byte address 0x4 - core index']
  #allocation1 [shape = 'u32[144,128]{1,0:T(1,128)}', space=vmem, size = 0x12000, scoped, tag = 'internal scratch']
  %s0 = inlined_call_operand.vmem [shape: f32[2,256,36], index: 0, kind: input, shape index: {}]
  %s1 = inlined_call_operand.vmem [shape: f32[8,36], index: 1, kind: input, shape index: {}]
  %s2 = inlined_call_operand.vmem [shape: f32[8,1], index: 2, kind: input, shape index: {}]
  %s3 = inlined_call_operand.hbm [shape: f32[2,8,256], index: 3, kind: output, shape index: {}]
  %s4 = sld [smem:[#allocation0]]
  $region45: #{tpu_custom_call.1} parent=0
    _
  %s6 = ssub.s32 1, %s4
  %s7 = scalar_select 0, %s6, %s4
  $region1: #{tpu_custom_call.1} parent=0
    #allocation2 [shape = 'u8[16384]{0}', space=vmem, size = 0x4000, scoped, tag = 'output window, operand 0']
    #allocation3 [shape = 's32[2]{0}', space=sflag, size = 0x8, scoped, tag = 'scoped memory for tpu_custom_call.1']
    %8 = vsyncpa [#allocation3], 0
    %s9 = scalar_lea.sflag [#allocation3], 1
    %10 = vsyncpa %s9, 0
    loop: start=0, step=1, limit=4
    $region2: #{tpu_custom_call.1} parent=1 // loop_pre_header
      _
    $region3: #{tpu_custom_call.1} parent=1 // loop_header
      %s12 = sphi 0, %s16
      %p13 = scmp.ge.s32.totalorder %s12, 4
      %s22 = sphi 0, %s24
      %s25 = sphi 0, %s22
      %s26 = sphi 0, %s25
      %s42 = sphi 0, %s26
      %s46 = sphi 0, %s46
      %s48 = sphi 0, %s46
      %s49 = sphi 0, %s48
      %s63 = sphi 0, %s49
      %s67 = sphi 0, %s67
      %s69 = sphi 0, %s67
      %s70 = sphi 0, %s69
      %s84 = sphi 0, %s70
      %s90 = sphi 0, %s92
      %s93 = sphi 0, %s90
      %s94 = sphi 0, %s93
      %s110 = sphi 0, %s94
    $region4: #{tpu_custom_call.1} parent=1 // loop_header_branch
      %15 = sbr.rel (%p13) target = $region8
    $region5: #{tpu_custom_call.1} parent=1 // loop_body
      %s17 = ssub.s32 %s12, 1
      %s18 = ssub.s32 %s12, 2
      %s19 = sadd.s32 %s12, 1
      %s20 = ssub.s32 %s12, %s19
      %p21 = scmp.eq.s32.totalorder %s20, 0
      %s23 = sadd.s32 %s22, 1
      %s24 = scalar_select %p21, %s22, %s23
      %p27 = pneg %p21
      %p28 = scmp.eq.s32.totalorder %s12, 1
      %p29 = por %p27, %p28
      %p30 = scmp.ne.s32.totalorder %s22, %s25
      %p31 = scmp.eq.s32.totalorder %s12, 0
      %p32 = por %p30, %p31
      %p33 = scmp.ne.s32.totalorder %s22, %s25
      %p34 = scmp.eq.s32.totalorder %s17, 1
      %p35 = por %p33, %p34
      %p36 = scmp.ne.s32.totalorder %s25, %s26
      %p37 = scmp.eq.s32.totalorder %s17, 0
      %p38 = por %p36, %p37
      %p39 = scmp.ne.s32.totalorder %s25, %s26
      %p40 = scmp.eq.s32.totalorder %s18, 1
      %p41 = por %p39, %p40
      %p43 = scmp.ne.s32.totalorder %s26, %s42
      %p44 = scmp.eq.s32.totalorder %s18, 0
      %p45 = por %p43, %p44
      %s47 = sadd.s32 %s46, 1
      %p50 = scmp.eq.s32.totalorder %s12, 1
      %p51 = scmp.ne.s32.totalorder %s46, %s48
      %p52 = scmp.eq.s32.totalorder %s12, 0
      %p53 = por %p51, %p52
      %p54 = scmp.ne.s32.totalorder %s46, %s48
      %p55 = scmp.eq.s32.totalorder %s17, 1
      %p56 = por %p54, %p55
      %p57 = scmp.ne.s32.totalorder %s48, %s49
      %p58 = scmp.eq.s32.totalorder %s17, 0
      %p59 = por %p57, %p58
      %p60 = scmp.ne.s32.totalorder %s48, %s49
      %p61 = scmp.eq.s32.totalorder %s18, 1
      %p62 = por %p60, %p61
      %p64 = scmp.ne.s32.totalorder %s49, %s63
      %p65 = scmp.eq.s32.totalorder %s18, 0
      %p66 = por %p64, %p65
      %s68 = sadd.s32 %s67, 1
      %p71 = scmp.eq.s32.totalorder %s12, 1
      %p72 = scmp.ne.s32.totalorder %s67, %s69
      %p73 = scmp.eq.s32.totalorder %s12, 0
      %p74 = por %p72, %p73
      %p75 = scmp.ne.s32.totalorder %s67, %s69
      %p76 = scmp.eq.s32.totalorder %s17, 1
      %p77 = por %p75, %p76
      %p78 = scmp.ne.s32.totalorder %s69, %s70
      %p79 = scmp.eq.s32.totalorder %s17, 0
      %p80 = por %p78, %p79
      %p81 = scmp.ne.s32.totalorder %s69, %s70
      %p82 = scmp.eq.s32.totalorder %s18, 1
      %p83 = por %p81, %p82
      %p85 = scmp.ne.s32.totalorder %s70, %s84
      %p86 = scmp.eq.s32.totalorder %s18, 0
      %p87 = por %p85, %p86
      %s88 = ssub.s32 %s12, %s19
      %p89 = scmp.eq.s32.totalorder %s88, 0
      %s91 = sadd.s32 %s90, 1
      %s92 = scalar_select %p89, %s90, %s91
      %p95 = pneg %p89
      %p96 = scmp.eq.s32.totalorder %s12, 1
      %p97 = por %p95, %p96
      %p98 = scmp.ne.s32.totalorder %s90, %s93
      %p99 = scmp.eq.s32.totalorder %s12, 0
      %p100 = por %p98, %p99
      %p101 = scmp.ne.s32.totalorder %s90, %s93
      %p102 = scmp.eq.s32.totalorder %s17, 1
      %p103 = por %p101, %p102
      %p104 = scmp.ne.s32.totalorder %s93, %s94
      %p105 = scmp.eq.s32.totalorder %s17, 0
      %p106 = por %p104, %p105
      %p107 = scmp.ne.s32.totalorder %s93, %s94
      %p108 = scmp.eq.s32.totalorder %s18, 1
      %p109 = por %p107, %p108
      %p111 = scmp.ne.s32.totalorder %s94, %s110
      %p112 = scmp.eq.s32.totalorder %s18, 0
      %p113 = por %p111, %p112
      %p114 = scmp.le.s32.totalorder 1, %s12
      %p115 = scmp.lt.s32.totalorder %s12, 3
      %p116 = pnand %p114, %p115
      %p117 = pneg %p116
      // Predicated region
      $region9: #{tpu_custom_call.1} parent=5 // pred_check
        _
      $region10: #{tpu_custom_call.1} parent=5 // pred_check_branch
        %119 = sbr.rel (%p116) target = $region12
      $region11: #{tpu_custom_call.1} parent=5 // pred_region
        %s120 = ssub.s32 %s12, 1
        // Predicated region
        $region13: #{tpu_custom_call.1} parent=11 // pred_check
          %p121 = pneg %p59
        $region14: #{tpu_custom_call.1} parent=11 // pred_check_branch
          %123 = sbr.rel (%p121) target = $region16
        $region15: #{tpu_custom_call.1} parent=11 // pred_region
          _
        $region16: #{tpu_custom_call.1} parent=11 // pred_fallthru
          _
        // Predicated region
        $region17: #{tpu_custom_call.1} parent=11 // pred_check
          %p124 = pneg %p80
        $region18: #{tpu_custom_call.1} parent=11 // pred_check_branch
          %126 = sbr.rel (%p124) target = $region20
        $region19: #{tpu_custom_call.1} parent=11 // pred_region
          _
        $region20: #{tpu_custom_call.1} parent=11 // pred_fallthru
          _
      $region12: #{tpu_custom_call.1} parent=5 // pred_fallthru
        _
      %p127 = scmp.lt.s32.totalorder %s12, 2
      // Predicated region
      $region21: #{tpu_custom_call.1} parent=5 // pred_check
        %p128 = pneg %p127
      $region22: #{tpu_custom_call.1} parent=5 // pred_check_branch
        %130 = sbr.rel (%p128) target = $region24
      $region23: #{tpu_custom_call.1} parent=5 // pred_region
        // Predicated region
        $region25: #{tpu_custom_call.1} parent=23 // pred_check
          %p131 = pneg %p32
        $region26: #{tpu_custom_call.1} parent=23 // pred_check_branch
          %133 = sbr.rel (%p131) target = $region28
        $region27: #{tpu_custom_call.1} parent=23 // pred_region
          %p134 = scmp.lt.s32.totalorder %s12, 1
          %s135 = scalar_select %p134, %s12, 1
          %s136 = smul.addr %s135, 32
          %s137 = smul.addr %s136, 8
          %s138 = scalar_lea.vmem %s0, %s137
        $region28: #{tpu_custom_call.1} parent=23 // pred_fallthru
          _
      $region24: #{tpu_custom_call.1} parent=5 // pred_fallthru
        _
      %p139 = scmp.le.s32.totalorder 1, %s12
      %p140 = scmp.lt.s32.totalorder %s12, 3
      %p141 = pnand %p139, %p140
      %p142 = pneg %p141
      // Predicated region
      $region29: #{tpu_custom_call.1} parent=5 // pred_check
        _
      $region30: #{tpu_custom_call.1} parent=5 // pred_check_branch
        %144 = sbr.rel (%p141) target = $region32
      $region31: #{tpu_custom_call.1} parent=5 // pred_region
        %s145 = ssub.s32 %s12, 1
        %p146 = scmp.lt.s32.totalorder %s17, 1
        %s147 = scalar_select %p146, %s17, 1
        %s148 = smul.addr %s147, 32
        %s149 = smul.addr %s148, 8
        %s150 = scalar_lea.vmem %s0, %s149
        %p151 = pneg %p38
        %p152 = pneg %p35
        %p153 = pneg %p59
        %p154 = pneg %p56
        %p155 = pneg %p80
        %p156 = pneg %p77
        %p157 = pneg %p106
        %p158 = pneg %p103
        %s159 = sand.u32 %s93, 1
        %s160 = scalar_lea.sflag [#allocation3], %s159
        %s161 = sand.u32 %s93, 1
        %s162 = smul.addr %s161, 16
        %s163 = scalar_lea.vmem [#allocation2], %s162
        %p164 = scmp.lt.s32.totalorder %s17, 1
        %s165 = scalar_select %p164, %s17, 1
        %s166 = smul.addr %s165, 32
        %s167 = smul.addr %s166, 8
        %s168 = scalar_lea.vmem %s0, %s167
        %v169 = vld [vmem:[%s1] sm:$0xff]
        %v170 = vld [vmem:[%s2] sm:$0xff]
        %v171 = vld [vmem:[%s168] sm:$0xff]
        %v172 = vld [vmem:[%s168 + $0x8] sm:$0xff]
        %v173 = vld [vmem:[%s168 + $0x10] sm:$0xff]
        %v174 = vld [vmem:[%s168 + $0x18] sm:$0xff]
        %v175 = vld [vmem:[%s168 + $0x20] sm:$0xff]
        %v176 = vld [vmem:[%s168 + $0x28] sm:$0xff]
        %v177 = vld [vmem:[%s168 + $0x30] sm:$0xff]
        %v178 = vld [vmem:[%s168 + $0x38] sm:$0xff]
        %v179 = vld [vmem:[%s168 + $0x40] sm:$0xff]
        %v180 = vld [vmem:[%s168 + $0x48] sm:$0xff]
        %v181 = vld [vmem:[%s168 + $0x50] sm:$0xff]
        %v182 = vld [vmem:[%s168 + $0x58] sm:$0xff]
        %v183 = vld [vmem:[%s168 + $0x60] sm:$0xff]
        %v184 = vld [vmem:[%s168 + $0x68] sm:$0xff]
        %v185 = vld [vmem:[%s168 + $0x70] sm:$0xff]
        %v186 = vld [vmem:[%s168 + $0x78] sm:$0xff]
        %v187 = vld [vmem:[%s168 + $0x80] sm:$0xff]
        %v188 = vld [vmem:[%s168 + $0x88] sm:$0xff]
        %v189 = vld [vmem:[%s168 + $0x90] sm:$0xff]
        %v190 = vld [vmem:[%s168 + $0x98] sm:$0xff]
        %v191 = vld [vmem:[%s168 + $0xa0] sm:$0xff]
        %v192 = vld [vmem:[%s168 + $0xa8] sm:$0xff]
        %v193 = vld [vmem:[%s168 + $0xb0] sm:$0xff]
        %v194 = vld [vmem:[%s168 + $0xb8] sm:$0xff]
        %v195 = vld [vmem:[%s168 + $0xc0] sm:$0xff]
        %v196 = vld [vmem:[%s168 + $0xc8] sm:$0xff]
        %v197 = vld [vmem:[%s168 + $0xd0] sm:$0xff]
        %v198 = vld [vmem:[%s168 + $0xd8] sm:$0xff]
        %v199 = vld [vmem:[%s168 + $0xe0] sm:$0xff]
        %v200 = vld [vmem:[%s168 + $0xe8] sm:$0xff]
        %v201 = vld [vmem:[%s168 + $0xf0] sm:$0xff]
        %v202 = vld [vmem:[%s168 + $0xf8] sm:$0xff]
        %204 = vset.pattern.permute.xlu0 0
        %205 = vperm.xlu0 %204, %v170
        %v206 = vpop.permute.xlu0 %205
        %vm208 = vcmask 293888
        %v210 = vsel %vm208, %v169, 0
        %v213 = vsel %vm208, %v171, 0
        %v216 = vsel %vm208, %v172, 0
        %v219 = vsel %vm208, %v173, 0
        %v222 = vsel %vm208, %v174, 0
        %v225 = vsel %vm208, %v175, 0
        %v228 = vsel %vm208, %v176, 0
        %v231 = vsel %vm208, %v177, 0
        %v234 = vsel %vm208, %v178, 0
        %v237 = vsel %vm208, %v179, 0
        %v240 = vsel %vm208, %v180, 0
        %v243 = vsel %vm208, %v181, 0
        %v246 = vsel %vm208, %v182, 0
        %v249 = vsel %vm208, %v183, 0
        %v252 = vsel %vm208, %v184, 0
        %v255 = vsel %vm208, %v185, 0
        %v258 = vsel %vm208, %v186, 0
        %v261 = vsel %vm208, %v187, 0
        %v264 = vsel %vm208, %v188, 0
        %v267 = vsel %vm208, %v189, 0
        %v270 = vsel %vm208, %v190, 0
        %v273 = vsel %vm208, %v191, 0
        %v276 = vsel %vm208, %v192, 0
        %v279 = vsel %vm208, %v193, 0
        %v282 = vsel %vm208, %v194, 0
        %v285 = vsel %vm208, %v195, 0
        %v288 = vsel %vm208, %v196, 0
        %v291 = vsel %vm208, %v197, 0
        %v294 = vsel %vm208, %v198, 0
        %v297 = vsel %vm208, %v199, 0
        %v300 = vsel %vm208, %v200, 0
        %v303 = vsel %vm208, %v201, 0
        %v306 = vsel %vm208, %v202, 0
        %308 = vmatprep.subr.mxu0 0.0
        %309 = vmatpush1.xpose.msra.mxu0 %v213
        %310 = vmatprep.subr.mxu0 0.0
        %311 = vmatpush1.xpose.msra.mxu0 %v216
        %312 = vmatprep.subr.mxu0 0.0
        %313 = vmatpush1.xpose.msra.mxu0 %v219
        %314 = vmatprep.subr.mxu0 0.0
        %315 = vmatpush1.xpose.msra.mxu0 %v222
        %316 = vmatprep.subr.mxu0 0.0
        %317 = vmatpush1.xpose.msra.mxu0 %v225
        %318 = vmatprep.subr.mxu0 0.0
        %319 = vmatpush1.xpose.msra.mxu0 %v228
        %320 = vmatprep.subr.mxu0 0.0
        %321 = vmatpush1.xpose.msra.mxu0 %v231
        %322 = vmatprep.subr.mxu0 0.0
        %323 = vmatpush1.xpose.msra.mxu0 %v234
        %324 = vmatprep.subr.mxu0 0.0
        %325 = vmatpush1.xpose.msra.mxu0 %v237
        %326 = vmatprep.subr.mxu0 0.0
        %327 = vmatpush1.xpose.msra.mxu0 %v240
        %328 = vmatprep.subr.mxu0 0.0
        %329 = vmatpush1.xpose.msra.mxu0 %v243
        %330 = vmatprep.subr.mxu0 0.0
        %331 = vmatpush1.xpose.msra.mxu0 %v246
        %332 = vmatprep.subr.mxu0 0.0
        %333 = vmatpush1.xpose.msra.mxu0 %v249
        %334 = vmatprep.subr.mxu0 0.0
        %335 = vmatpush1.xpose.msra.mxu0 %v252
        %336 = vmatprep.subr.mxu0 0.0
        %337 = vmatpush1.xpose.msra.mxu0 %v255
        %338 = vmatprep.subr.mxu0 0.0
        %339 = vmatpush1.xpose.msra.mxu0 %v258
        %340 = vmatprep.subr.mxu0 0.0
        %341 = vmatpush1.xpose.msra.mxu0 %v261
        %342 = vmatprep.subr.mxu0 0.0
        %343 = vmatpush1.xpose.msra.mxu0 %v264
        %344 = vmatprep.subr.mxu0 0.0
        %345 = vmatpush1.xpose.msra.mxu0 %v267
        %346 = vmatprep.subr.mxu0 0.0
        %347 = vmatpush1.xpose.msra.mxu0 %v270
        %348 = vmatprep.subr.mxu0 0.0
        %349 = vmatpush1.xpose.msra.mxu0 %v273
        %350 = vmatprep.subr.mxu0 0.0
        %351 = vmatpush1.xpose.msra.mxu0 %v276
        %352 = vmatprep.subr.mxu0 0.0
        %353 = vmatpush1.xpose.msra.mxu0 %v279
        %354 = vmatprep.subr.mxu0 0.0
        %355 = vmatpush1.xpose.msra.mxu0 %v282
        %356 = vmatprep.subr.mxu0 0.0
        %357 = vmatpush1.xpose.msra.mxu0 %v285
        %358 = vmatprep.subr.mxu0 0.0
        %359 = vmatpush1.xpose.msra.mxu0 %v288
        %360 = vmatprep.subr.mxu0 0.0
        %361 = vmatpush1.xpose.msra.mxu0 %v291
        %362 = vmatprep.subr.mxu0 0.0
        %363 = vmatpush1.xpose.msra.mxu0 %v294
        %364 = vmatprep.subr.mxu0 0.0
        %365 = vmatpush1.xpose.msra.mxu0 %v297
        %366 = vmatprep.subr.mxu0 0.0
        %367 = vmatpush1.xpose.msra.mxu0 %v300
        %368 = vmatprep.subr.mxu0 0.0
        %369 = vmatpush1.xpose.msra.mxu0 %v303
        %370 = vmatprep.subr.mxu0 0.0
        %371 = vmatpush1.xpose.msra.mxu0 %v306
        %372 = vmatprep.mubr.f32.mxu0 0.0
        %373 = vmatmul.mubr.f32.gmra.mrb[0].mxu0 %v210
        %v374 = vpop.f32.mrb[0].mxu0
        %v375 = vadd.f32 %v206, %v374
        %v376 = vpop.f32.mrb[0].mxu0
        %v377 = vadd.f32 %v206, %v376
        %378 = vdwg.mxu0
        %379 = vst [vmem:[%s163] sm:$0xff] %v375
        %380 = vst [vmem:[%s163 + $0x8] sm:$0xff] %v377
        %s381 = sand.u32 %s93, 1
        %s382 = scalar_lea.sflag [#allocation3], %s381
        %s383 = sand.u32 %s93, 1
        %s384 = smul.addr %s383, 16
        %s385 = scalar_lea.vmem [#allocation2], %s384
        // Predicated region
        $region33: #{tpu_custom_call.1} parent=31 // pred_check
          %p386 = pneg %p103
        $region34: #{tpu_custom_call.1} parent=31 // pred_check_branch
          %388 = sbr.rel (%p386) target = $region36
        $region35: #{tpu_custom_call.1} parent=31 // pred_region
          %s390 = ssub.s32 256, 256
          %391 = vsyncadd %s382, %s390
          %s392 = smul.addr %s17, 2
          %s393 = smul.addr %s392, 128
          %s394 = scalar_lea.hbm %s3, %s393
          %s396 = sshll.u32 %s385, 4
          %s397 = int_to_ptr.vmem [resolvable:$true] %s396
          %399 = dma.vmem_to_hbm [thread:$0]  %s397, 256, %s394, %s382
        $region36: #{tpu_custom_call.1} parent=31 // pred_fallthru
          _
      $region32: #{tpu_custom_call.1} parent=5 // pred_fallthru
        _
      %p400 = scmp.le.s32.totalorder 2, %s12
      // Predicated region
      $region37: #{tpu_custom_call.1} parent=5 // pred_check
        %p401 = pneg %p400
      $region38: #{tpu_custom_call.1} parent=5 // pred_check_branch
        %403 = sbr.rel (%p401) target = $region40
      $region39: #{tpu_custom_call.1} parent=5 // pred_region
        %s404 = ssub.s32 %s12, 2
        // Predicated region
        $region41: #{tpu_custom_call.1} parent=39 // pred_check
          %p405 = pneg %p109
        $region42: #{tpu_custom_call.1} parent=39 // pred_check_branch
          %407 = sbr.rel (%p405) target = $region44
        $region43: #{tpu_custom_call.1} parent=39 // pred_region
          %s408 = sand.u32 %s94, 1
          %s409 = scalar_lea.sflag [#allocation3], %s408
          %s410 = sand.u32 %s94, 1
          %s411 = smul.addr %s410, 16
          %s412 = scalar_lea.vmem [#allocation2], %s411
          %413 = dma.done %s409, 256
        $region44: #{tpu_custom_call.1} parent=39 // pred_fallthru
          _
      $region40: #{tpu_custom_call.1} parent=5 // pred_fallthru
        _
    $region6: #{tpu_custom_call.1} parent=1 // loop_footer
      %s16 = sadd.s32 1, %s12
    $region7: #{tpu_custom_call.1} parent=1 // loop_footer_branch
      %11 = sbr.rel target = $region3
    $region8: #{tpu_custom_call.1} parent=1 // loop_exit
      _
    %414 = vsyncpa [#allocation3], 1
    %s415 = scalar_lea.sflag [#allocation3], 1
    %416 = vsyncpa %s415, 1

</llo_original>
